<compile_context>
chip_gen: v6e
topology: v6e:2x2x1
jax: 0.10.0
libtpu: 0.0.40
codegen_flags: <defaults>
</compile_context>

<pallas_src>
import functools

import jax
import jax.numpy as jnp
import numpy as np
from jax.experimental import pallas as pl
from jax.experimental.pallas import tpu as pltpu


def _round_up(x: int, m: int) -> int:
    return ((x + m - 1) // m) * m


def _halve_tile(tm: int) -> int:
    return max(8, _round_up(tm // 2, 8))


# ----------------------------------------------------------------------------
# Kernel body: fully-unrolled layer loop (static Python loop -> LLO visibility)
# ----------------------------------------------------------------------------
def _gnn_head_kernel(x_ref, *refs, num_layers: int, negative_slope: float,
                     compute_dtype):
    """refs = (w0, b0, w1, b1, ..., w_{L-1}, b_{L-1}, o_ref)."""
    o_ref = refs[-1]
    wb_refs = refs[:-1]

    # x streamed in its own dtype; cast to the matmul dtype on the VPU (cheap,
    # avoids an extra HBM pass that a wrapper-side cast would cost).
    h = x_ref[...].astype(compute_dtype)                 # (TM, in_dim)
    for l in range(num_layers):
        w = wb_refs[2 * l][...]                          # (d_l, d_{l+1}), VMEM-resident
        b = wb_refs[2 * l + 1][...]                      # (1, d_{l+1}), f32

        acc = jnp.dot(h, w, preferred_element_type=jnp.float32)  # MXU, f32 acc
        acc = acc + b                                             # f32 epilogue (VPU)
        if l < num_layers - 1:
            acc = jnp.where(acc > 0, acc, negative_slope * acc)   # LeakyReLU(0.01)
            h = acc.astype(compute_dtype)
        else:
            o_ref[...] = acc.astype(o_ref.dtype)                  # exact (TM, out_dim) store


# ----------------------------------------------------------------------------
# Wrapper: tiling, BlockSpecs, generation-aware VMEM budget
# ----------------------------------------------------------------------------
def gnn_inductive_node_head(x, weights, biases, *, negative_slope=0.01,
                            tile_m=None, compute_dtype=None):
    """Fused forward of GNNInductiveNodeHead.

    x:        (N, in_dim)
    weights:  list of length num_layers; weights[l] has shape (d_l, d_{l+1})
              (already transposed relative to torch.nn.Linear.weight).
    biases:   list of length num_layers; biases[l] has shape (d_{l+1},).
    Returns:  (N, out_dim), dtype of x.
    """
    num_layers = len(weights)
    assert num_layers >= 1 and len(biases) == num_layers
    N, in_dim = x.shape
    dims = [in_dim] + [int(w.shape[1]) for w in weights]
    for l in range(num_layers):
        assert weights[l].shape == (dims[l], dims[l + 1])
        assert biases[l].shape == (dims[l + 1],)
    out_dim = dims[-1]
    out_dtype = x.dtype

    if compute_dtype is None:
        # bf16 matmul operands by default for f32 inputs (f32 accumulation kept).
        compute_dtype = jnp.bfloat16 if x.dtype == jnp.float32 else x.dtype
    compute_dtype = jnp.dtype(compute_dtype)
    c_sz = compute_dtype.itemsize
    x_sz = jnp.dtype(x.dtype).itemsize
    o_sz = jnp.dtype(out_dtype).itemsize

    # --- parameter operands (tiny, one-time): weights in compute dtype, bias f32
    params = []
    for l in range(num_layers):
        params.append(jnp.asarray(weights[l], dtype=compute_dtype))
        params.append(jnp.asarray(biases[l], dtype=jnp.float32).reshape(1, dims[l + 1]))

    # --- constant-index parameter specs, single-buffered ----------------------
    def _const_spec(shape):
        try:
            return pl.BlockSpec(shape, lambda i: (0, 0),
                                pipeline_mode=pl.Buffered(1)), 1
        except (TypeError, ValueError):        # older JAX without pipeline_mode
            return pl.BlockSpec(shape, lambda i: (0, 0)), 2

    param_specs = []
    param_bufs = 1
    for l in range(num_layers):
        spec_w, nb_w = _const_spec((dims[l], dims[l + 1]))
        spec_b, nb_b = _const_spec((1, dims[l + 1]))
        param_specs += [spec_w, spec_b]
        param_bufs = max(param_bufs, nb_w, nb_b)

    param_bytes = sum(dims[l] * dims[l + 1] * c_sz + dims[l + 1] * 4
                      for l in range(num_layers))

    # --- generation-aware VMEM budget -----------------------------------------
    try:
        vmem_cap = int(pltpu.get_tpu_info().vmem_capacity_bytes)
    except Exception:
        vmem_cap = 64 * 1024 * 1024            # conservative fallback (v7x per-TC)
    budget = min(int(vmem_cap * 0.75), vmem_cap - (16 << 20))

    def _vmem_need(tm):
        need = 2 * tm * in_dim * x_sz          # double-buffered x stream
        need += 2 * tm * out_dim * o_sz        # double-buffered output stream
        need += param_bufs * param_bytes       # resident weights + biases
        wmax = max(dims[1:])
        need += tm * wmax * 4 + tm * wmax * c_sz   # live f32 acc + compute-dtype h
        return need

    if tile_m is not None:
        TM = max(8, _round_up(int(tile_m), 8))
    else:
        TM = min(2048, _round_up(N, 8))
        while TM > 128 and _vmem_need(TM) > budget:
            TM = _halve_tile(TM)
        # Give the second TensorCore (v7x megacore) something to do.
        while TM >= 512 and pl.cdiv(N, TM) < 2:
            TM = _halve_tile(TM)

    grid = (pl.cdiv(N, TM),)

    in_specs = [pl.BlockSpec((TM, in_dim), lambda i: (i, 0))] + param_specs
    out_spec = pl.BlockSpec((TM, out_dim), lambda i: (i, 0))

    vmem_limit = int(min(max(_round_up(_vmem_need(TM), 1 << 20) + (8 << 20),
                             32 << 20),
                         vmem_cap - (8 << 20)))

    flops = 2 * N * sum(dims[l] * dims[l + 1] for l in range(num_layers))
    bytes_accessed = N * in_dim * x_sz + N * out_dim * o_sz + param_bytes
    cost = pl.CostEstimate(flops=flops, transcendentals=0,
                           bytes_accessed=bytes_accessed)

    out = pl.pallas_call(
        functools.partial(_gnn_head_kernel,
                          num_layers=num_layers,
                          negative_slope=negative_slope,
                          compute_dtype=compute_dtype),
        out_shape=jax.ShapeDtypeStruct((N, out_dim), out_dtype),
        grid_spec=pltpu.PrefetchScalarGridSpec(
            num_scalar_prefetch=0,
            grid=grid,
            in_specs=in_specs,
            out_specs=out_spec,
        ),
        compiler_params=pltpu.CompilerParams(
            dimension_semantics=("parallel",),
            vmem_limit_bytes=vmem_limit,
        ),
        cost_estimate=cost,
    )(x, *params)

    return out


# ----------------------------------------------------------------------------
# Pure-JAX reference (PyTorch semantics: Linear + LeakyReLU between layers)
# ----------------------------------------------------------------------------
def _reference(x, weights, biases, negative_slope=0.01):
    h = x
    L = len(weights)
    for l in range(L):
        h = jnp.dot(h, weights[l], precision=jax.lax.Precision.HIGHEST) + biases[l]
        if l < L - 1:
            h = jnp.where(h > 0, h, negative_slope * h)
    return h


if __name__ == "__main__":
    key = jax.random.PRNGKey(0)
    N, in_dim, hid_dim, out_dim, num_layers = 64, 48, 96, 7, 3
    dims = [in_dim] + [hid_dim] * (num_layers - 1) + [out_dim]

    keys = jax.random.split(key, 2 * num_layers + 1)
    x = jax.random.normal(keys[0], (N, in_dim), dtype=jnp.float32)
    weights, biases = [], []
    for l in range(num_layers):
        w = jax.random.normal(keys[1 + 2 * l], (dims[l], dims[l + 1]),
                              dtype=jnp.float32) / np.sqrt(dims[l])
        b = 0.1 * jax.random.normal(keys[2 + 2 * l], (dims[l + 1],), dtype=jnp.float32)
        weights.append(w)
        biases.append(b)

    ref = _reference(x, weights, biases)

    # Default path: bf16 matmul operands, f32 accumulation + epilogue.
    out_bf16 = jax.block_until_ready(gnn_inductive_node_head(x, weights, biases))
    assert out_bf16.shape == (N, out_dim)
    np.testing.assert_allclose(np.asarray(out_bf16), np.asarray(ref),
                               rtol=5e-2, atol=5e-2)

    # Full-f32 path (tight tolerance).
    out_f32 = jax.block_until_ready(
        gnn_inductive_node_head(x, weights, biases, compute_dtype=jnp.float32))
    np.testing.assert_allclose(np.asarray(out_f32), np.asarray(ref),
                               rtol=1e-2, atol=1e-2)

    # Partial-last-tile path (N not a multiple of the node tile; OOB rows
    # are read-don't-care and dropped on write).
    N2 = 50
    x2 = jax.random.normal(keys[0], (N2, in_dim), dtype=jnp.float32)
    out2 = jax.block_until_ready(
        gnn_inductive_node_head(x2, weights, biases, tile_m=32))
    assert out2.shape == (N2, out_dim)
    np.testing.assert_allclose(np.asarray(out2),
                               np.asarray(_reference(x2, weights, biases)),
                               rtol=5e-2, atol=5e-2)

    print("KERNEL_OK")
</pallas_src>

<mosaic_0001>
module attributes {stable_mosaic.version = 11 : i64} {
  func.func @_gnn_head_kernel(%arg0: i32, %arg1: memref<64x48xf32, #tpu.memory_space<vmem>>, %arg2: memref<48x96xbf16, #tpu.memory_space<vmem>>, %arg3: memref<1x96xf32, #tpu.memory_space<vmem>>, %arg4: memref<96x96xbf16, #tpu.memory_space<vmem>>, %arg5: memref<1x96xf32, #tpu.memory_space<vmem>>, %arg6: memref<96x7xbf16, #tpu.memory_space<vmem>>, %arg7: memref<1x7xf32, #tpu.memory_space<vmem>>, %arg8: memref<64x7xf32, #tpu.memory_space<vmem>>) attributes {dimension_semantics = [#tpu.dimension_semantics<parallel>], iteration_bounds = array<i64: 1>, scalar_prefetch = 0 : i64, scratch_operands = 0 : i64, tpu.core_type = #tpu.core_type<tc>, window_params = [{transform_indices = @transform_0, window_bounds = array<i64: 64, 48>}, {pipeline_mode = #tpu.pipeline_mode<synchronous>, transform_indices = @transform_1, window_bounds = array<i64: 48, 96>}, {pipeline_mode = #tpu.pipeline_mode<synchronous>, transform_indices = @transform_2, window_bounds = array<i64: 1, 96>}, {pipeline_mode = #tpu.pipeline_mode<synchronous>, transform_indices = @transform_3, window_bounds = array<i64: 96, 96>}, {pipeline_mode = #tpu.pipeline_mode<synchronous>, transform_indices = @transform_4, window_bounds = array<i64: 1, 96>}, {pipeline_mode = #tpu.pipeline_mode<synchronous>, transform_indices = @transform_5, window_bounds = array<i64: 96, 7>}, {pipeline_mode = #tpu.pipeline_mode<synchronous>, transform_indices = @transform_6, window_bounds = array<i64: 1, 7>}, {transform_indices = @transform_7, window_bounds = array<i64: 64, 7>}]} {
    %c0 = arith.constant 0 : index
    %c0_0 = arith.constant 0 : index
    %0 = vector.load %arg1[%c0, %c0_0] : memref<64x48xf32, #tpu.memory_space<vmem>>, vector<64x48xf32>
    %1 = arith.truncf %0 : vector<64x48xf32> to vector<64x48xbf16>
    %c0_1 = arith.constant 0 : index
    %c0_2 = arith.constant 0 : index
    %2 = vector.load %arg2[%c0_1, %c0_2] : memref<48x96xbf16, #tpu.memory_space<vmem>>, vector<48x96xbf16>
    %c0_3 = arith.constant 0 : index
    %c0_4 = arith.constant 0 : index
    %3 = vector.load %arg3[%c0_3, %c0_4] : memref<1x96xf32, #tpu.memory_space<vmem>>, vector<1x96xf32>
    %cst = arith.constant dense<0.000000e+00> : vector<64x96xf32>
    %4 = tpu.matmul %1, %2, %cst {dimension_numbers = #tpu.dot_dimension_numbers<[1], [0], [0], [1], [0, 0, 1, 1], [], []>} : vector<64x48xbf16>, vector<48x96xbf16>, vector<64x96xf32> -> vector<64x96xf32>
    %5 = vector.broadcast %3 : vector<1x96xf32> to vector<64x96xf32>
    %6 = arith.addf %4, %5 : vector<64x96xf32>
    %cst_5 = arith.constant 0.000000e+00 : f32
    %7 = vector.broadcast %cst_5 : f32 to vector<64x96xf32>
    %8 = arith.cmpf ogt, %6, %7 : vector<64x96xf32>
    %cst_6 = arith.constant 0.00999999977 : f32
    %9 = vector.broadcast %cst_6 : f32 to vector<64x96xf32>
    %10 = arith.mulf %9, %6 : vector<64x96xf32>
    %11 = arith.select %8, %6, %10 : vector<64x96xi1>, vector<64x96xf32>
    %12 = arith.truncf %11 : vector<64x96xf32> to vector<64x96xbf16>
    %c0_7 = arith.constant 0 : index
    %c0_8 = arith.constant 0 : index
    %13 = vector.load %arg4[%c0_7, %c0_8] : memref<96x96xbf16, #tpu.memory_space<vmem>>, vector<96x96xbf16>
    %c0_9 = arith.constant 0 : index
    %c0_10 = arith.constant 0 : index
    %14 = vector.load %arg5[%c0_9, %c0_10] : memref<1x96xf32, #tpu.memory_space<vmem>>, vector<1x96xf32>
    %cst_11 = arith.constant dense<0.000000e+00> : vector<64x96xf32>
    %15 = tpu.matmul %12, %13, %cst_11 {dimension_numbers = #tpu.dot_dimension_numbers<[1], [0], [0], [1], [0, 0, 1, 1], [], []>} : vector<64x96xbf16>, vector<96x96xbf16>, vector<64x96xf32> -> vector<64x96xf32>
    %16 = vector.broadcast %14 : vector<1x96xf32> to vector<64x96xf32>
    %17 = arith.addf %15, %16 : vector<64x96xf32>
    %cst_12 = arith.constant 0.000000e+00 : f32
    %18 = vector.broadcast %cst_12 : f32 to vector<64x96xf32>
    %19 = arith.cmpf ogt, %17, %18 : vector<64x96xf32>
    %cst_13 = arith.constant 0.00999999977 : f32
    %20 = vector.broadcast %cst_13 : f32 to vector<64x96xf32>
    %21 = arith.mulf %20, %17 : vector<64x96xf32>
    %22 = arith.select %19, %17, %21 : vector<64x96xi1>, vector<64x96xf32>
    %23 = arith.truncf %22 : vector<64x96xf32> to vector<64x96xbf16>
    %c0_14 = arith.constant 0 : index
    %c0_15 = arith.constant 0 : index
    %24 = vector.load %arg6[%c0_14, %c0_15] : memref<96x7xbf16, #tpu.memory_space<vmem>>, vector<96x7xbf16>
    %c0_16 = arith.constant 0 : index
    %c0_17 = arith.constant 0 : index
    %25 = vector.load %arg7[%c0_16, %c0_17] : memref<1x7xf32, #tpu.memory_space<vmem>>, vector<1x7xf32>
    %cst_18 = arith.constant dense<0.000000e+00> : vector<64x7xf32>
    %26 = tpu.matmul %23, %24, %cst_18 {dimension_numbers = #tpu.dot_dimension_numbers<[1], [0], [0], [1], [0, 0, 1, 1], [], []>} : vector<64x96xbf16>, vector<96x7xbf16>, vector<64x7xf32> -> vector<64x7xf32>
    %27 = vector.broadcast %25 : vector<1x7xf32> to vector<64x7xf32>
    %28 = arith.addf %26, %27 : vector<64x7xf32>
    %c0_19 = arith.constant 0 : index
    %c0_20 = arith.constant 0 : index
    %29 = vector.load %arg8[%c0_19, %c0_20] : memref<64x7xf32, #tpu.memory_space<vmem>>, vector<64x7xf32>
    tpu.vector_store %arg8[%c0_19, %c0_20], %28 {strides = array<i32>} : memref<64x7xf32, #tpu.memory_space<vmem>>, vector<64x7xf32>,
    return
  }
  func.func @transform_0(%arg0: i32) -> (i32, i32) {
    %c0_i32 = arith.constant 0 : i32
    %c0_i32_0 = arith.constant 0 : i32
    return %arg0, %c0_i32 : i32, i32
  }
  func.func @transform_1(%arg0: i32) -> (i32, i32) {
    %c0_i32 = arith.constant 0 : i32
    %c0_i32_0 = arith.constant 0 : i32
    %c0_i32_1 = arith.constant 0 : i32
    return %c0_i32, %c0_i32_0 : i32, i32
  }
  func.func @transform_2(%arg0: i32) -> (i32, i32) {
    %c0_i32 = arith.constant 0 : i32
    %c0_i32_0 = arith.constant 0 : i32
    %c0_i32_1 = arith.constant 0 : i32
    return %c0_i32, %c0_i32_0 : i32, i32
  }
  func.func @transform_3(%arg0: i32) -> (i32, i32) {
    %c0_i32 = arith.constant 0 : i32
    %c0_i32_0 = arith.constant 0 : i32
    %c0_i32_1 = arith.constant 0 : i32
    return %c0_i32, %c0_i32_0 : i32, i32
  }
  func.func @transform_4(%arg0: i32) -> (i32, i32) {
    %c0_i32 = arith.constant 0 : i32
    %c0_i32_0 = arith.constant 0 : i32
    %c0_i32_1 = arith.constant 0 : i32
    return %c0_i32, %c0_i32_0 : i32, i32
  }
  func.func @transform_5(%arg0: i32) -> (i32, i32) {
    %c0_i32 = arith.constant 0 : i32
    %c0_i32_0 = arith.constant 0 : i32
    %c0_i32_1 = arith.constant 0 : i32
    return %c0_i32, %c0_i32_0 : i32, i32
  }
  func.func @transform_6(%arg0: i32) -> (i32, i32) {
    %c0_i32 = arith.constant 0 : i32
    %c0_i32_0 = arith.constant 0 : i32
    %c0_i32_1 = arith.constant 0 : i32
    return %c0_i32, %c0_i32_0 : i32, i32
  }
  func.func @transform_7(%arg0: i32) -> (i32, i32) {
    %c0_i32 = arith.constant 0 : i32
    %c0_i32_0 = arith.constant 0 : i32
    return %arg0, %c0_i32 : i32, i32
  }
}

</mosaic_0001>

<llo_original>
// kernel: tpu_custom_call.1
$region0: #{tpu_custom_call.1}
  #allocation0 [shape = 'u32[]', space=smem, size = 0x4, offset = 0x4, fixed_abs, tag = 'smem constant byte address 0x4 - core index']
  #allocation1 [shape = 'u32[144,128]{1,0:T(1,128)}', space=vmem, size = 0x12000, scoped, tag = 'internal scratch']
  %s0 = inlined_call_operand.vmem [shape: f32[64,48], index: 0, kind: input, shape index: {}]
  %s1 = inlined_call_operand.vmem [shape: bf16[48,96], index: 1, kind: input, shape index: {}]
  %s2 = inlined_call_operand.vmem [shape: f32[1,96], index: 2, kind: input, shape index: {}]
  %s3 = inlined_call_operand.vmem [shape: bf16[96,96], index: 3, kind: input, shape index: {}]
  %s4 = inlined_call_operand.vmem [shape: f32[1,96], index: 4, kind: input, shape index: {}]
  %s5 = inlined_call_operand.vmem [shape: bf16[96,7], index: 5, kind: input, shape index: {}]
  %s6 = inlined_call_operand.vmem [shape: f32[1,7], index: 6, kind: input, shape index: {}]
  %s7 = inlined_call_operand.vmem [shape: f32[64,7], index: 7, kind: output, shape index: {}]
  %s8 = sld [smem:[#allocation0]]
  $region38: #{tpu_custom_call.1} parent=0
    _
  %s10 = ssub.s32 1, %s8
  %s11 = scalar_select 0, %s10, %s8
  // Predicated region
  $region2: #{tpu_custom_call.1} parent=0 // pred_check
    _
  $region3: #{tpu_custom_call.1} parent=0 // pred_check_branch
    %13 = sbr.rel (0) target = $region5
  $region4: #{tpu_custom_call.1} parent=0 // pred_region
    _
  $region5: #{tpu_custom_call.1} parent=0 // pred_fallthru
    _
  // Predicated region
  $region6: #{tpu_custom_call.1} parent=0 // pred_check
    _
  $region7: #{tpu_custom_call.1} parent=0 // pred_check_branch
    %15 = sbr.rel (0) target = $region9
  $region8: #{tpu_custom_call.1} parent=0 // pred_region
    _
  $region9: #{tpu_custom_call.1} parent=0 // pred_fallthru
    _
  // Predicated region
  $region10: #{tpu_custom_call.1} parent=0 // pred_check
    _
  $region11: #{tpu_custom_call.1} parent=0 // pred_check_branch
    %17 = sbr.rel (0) target = $region13
  $region12: #{tpu_custom_call.1} parent=0 // pred_region
    _
  $region13: #{tpu_custom_call.1} parent=0 // pred_fallthru
    _
  // Predicated region
  $region14: #{tpu_custom_call.1} parent=0 // pred_check
    _
  $region15: #{tpu_custom_call.1} parent=0 // pred_check_branch
    %19 = sbr.rel (0) target = $region17
  $region16: #{tpu_custom_call.1} parent=0 // pred_region
    _
  $region17: #{tpu_custom_call.1} parent=0 // pred_fallthru
    _
  // Predicated region
  $region18: #{tpu_custom_call.1} parent=0 // pred_check
    _
  $region19: #{tpu_custom_call.1} parent=0 // pred_check_branch
    %21 = sbr.rel (0) target = $region21
  $region20: #{tpu_custom_call.1} parent=0 // pred_region
    _
  $region21: #{tpu_custom_call.1} parent=0 // pred_fallthru
    _
  // Predicated region
  $region22: #{tpu_custom_call.1} parent=0 // pred_check
    _
  $region23: #{tpu_custom_call.1} parent=0 // pred_check_branch
    %23 = sbr.rel (0) target = $region25
  $region24: #{tpu_custom_call.1} parent=0 // pred_region
    _
  $region25: #{tpu_custom_call.1} parent=0 // pred_fallthru
    _
  // Predicated region
  $region26: #{tpu_custom_call.1} parent=0 // pred_check
    _
  $region27: #{tpu_custom_call.1} parent=0 // pred_check_branch
    %25 = sbr.rel (0) target = $region29
  $region28: #{tpu_custom_call.1} parent=0 // pred_region
    _
  $region29: #{tpu_custom_call.1} parent=0 // pred_fallthru
    _
  %v27 = vld [vmem:[%s0] sm:$0xff]
  %v28 = vld [vmem:[%s0 + $0x8] sm:$0xff]
  %v29 = vld [vmem:[%s0 + $0x10] sm:$0xff]
  %v30 = vld [vmem:[%s0 + $0x18] sm:$0xff]
  %v31 = vld [vmem:[%s0 + $0x20] sm:$0xff]
  %v32 = vld [vmem:[%s0 + $0x28] sm:$0xff]
  %v33 = vld [vmem:[%s0 + $0x30] sm:$0xff]
  %v34 = vld [vmem:[%s0 + $0x38] sm:$0xff]
  %v35 = vpack.c.bf16 %v28, %v27
  %v36 = vpack.c.bf16 %v30, %v29
  %v37 = vpack.c.bf16 %v32, %v31
  %v38 = vpack.c.bf16 %v34, %v33
  %v39 = vld [vmem:[%s1] sm:$0xf]
  %v40 = vld [vmem:[%s1 + $0x4] sm:$0xf]
  %v41 = vld [vmem:[%s1 + $0x8] sm:$0xf]
  %v42 = vld [vmem:[%s1 + $0xc] sm:$0xf]
  %v43 = vld [vmem:[%s1 + $0x10] sm:$0xf]
  %v44 = vld [vmem:[%s1 + $0x14] sm:$0xf]
  %v45 = vld [vmem:[%s2] sm:$0x1]
  %v47 = vlaneseq
  %v48 = vshrl.u32 %v47, 7
  %v49 = vsub.s32 0, %v48
  %v50 = vrot.slane %v45, %v49
  %v58 = vunpack.c.l.b16 %v39
  %v59 = vunpack.c.l.b16 %v40
  %v60 = vunpack.c.l.b16 %v41
  %v61 = vunpack.c.l.b16 %v42
  %v62 = vunpack.c.l.b16 %v43
  %v63 = vunpack.c.l.b16 %v44
  %v64 = vpack.c.b16 %v59, %v58
  %v65 = vpack.c.b16 %v61, %v60
  %v66 = vpack.c.b16 %v63, %v62
  %vm70 = vcmask 392192
  %v72 = vsel %vm70, %v35, 0
  %v75 = vsel %vm70, %v36, 0
  %v78 = vsel %vm70, %v37, 0
  %v81 = vsel %vm70, %v38, 0
  %83 = vmatprep.subr.bf16.mxu0 0
  %84 = vmatpush1.bf16.msra.mxu0 0
  %85 = vmatprep.subr.bf16.mxu0 0
  %86 = vmatpush1.bf16.msra.mxu0 0
  %87 = vmatprep.subr.bf16.mxu0 0
  %88 = vmatpush1.bf16.msra.mxu0 0
  %89 = vmatprep.subr.bf16.mxu0 0
  %90 = vmatpush1.bf16.msra.mxu0 0
  %91 = vmatprep.subr.bf16.mxu0 0
  %92 = vmatpush1.bf16.msra.mxu0 0
  %93 = vmatprep.subr.bf16.mxu0 0
  %94 = vmatpush1.bf16.msra.mxu0 %v66
  %95 = vmatprep.subr.bf16.mxu0 0
  %96 = vmatpush1.bf16.msra.mxu0 %v65
  %97 = vmatprep.subr.bf16.mxu0 0
  %98 = vmatpush1.bf16.msra.mxu0 %v64
  %99 = vmatprep.subr.bf16.mxu0 0
  %100 = vmatpush2.bf16.msra.mxu0 0
  %101 = vmatprep.subr.bf16.mxu0 0
  %102 = vmatpush2.bf16.msra.mxu0 0
  %103 = vmatprep.subr.bf16.mxu0 0
  %104 = vmatpush2.bf16.msra.mxu0 0
  %105 = vmatprep.subr.bf16.mxu0 0
  %106 = vmatpush2.bf16.msra.mxu0 0
  %107 = vmatprep.subr.bf16.mxu0 0
  %108 = vmatpush2.bf16.msra.mxu0 0
  %109 = vmatprep.subr.bf16.mxu0 0
  %110 = vmatpush2.bf16.msra.mxu0 0
  %111 = vmatprep.subr.bf16.mxu0 0
  %112 = vmatpush2.bf16.msra.mxu0 0
  %113 = vmatprep.subr.bf16.mxu0 0
  %114 = vmatpush2.bf16.msra.mxu0 0
  %115 = vmatprep.mubr.bf16.mxu0 0
  %116 = vmatmul.mubr.bf16.gmra.mxu0 %v72
  %v117 = vpop.f32.mrf.mxu0
  %v118 = vadd.f32 %v50, %v117
  %v119 = vpop.f32.mrf.mxu0
  %v120 = vpop.f32.mrf.mxu0
  %v121 = vadd.f32 %v50, %v120
  %v122 = vpop.f32.mrf.mxu0
  %123 = vmatprep.mubr.bf16.mxu0 0
  %124 = vmatmul.mubr.bf16.gmra.mxu0 %v75
  %v125 = vpop.f32.mrf.mxu0
  %v126 = vadd.f32 %v50, %v125
  %v127 = vpop.f32.mrf.mxu0
  %v128 = vpop.f32.mrf.mxu0
  %v129 = vadd.f32 %v50, %v128
  %v130 = vpop.f32.mrf.mxu0
  %131 = vmatprep.mubr.bf16.mxu0 0
  %132 = vmatmul.mubr.bf16.gmra.mxu0 %v78
  %v133 = vpop.f32.mrf.mxu0
  %v134 = vadd.f32 %v50, %v133
  %v135 = vpop.f32.mrf.mxu0
  %v136 = vpop.f32.mrf.mxu0
  %v137 = vadd.f32 %v50, %v136
  %v138 = vpop.f32.mrf.mxu0
  %139 = vmatprep.mubr.bf16.mxu0 0
  %140 = vmatmul.mubr.bf16.gmra.mxu0 %v81
  %v141 = vpop.f32.mrf.mxu0
  %v142 = vadd.f32 %v50, %v141
  %v143 = vpop.f32.mrf.mxu0
  %v144 = vpop.f32.mrf.mxu0
  %v145 = vadd.f32 %v50, %v144
  %v146 = vpop.f32.mrf.mxu0
  %147 = vdwg.mxu0
  %vm148 = vcmp.gt.f32.partialorder %v118, 0.0
  %vm149 = vcmp.gt.f32.partialorder %v121, 0.0
  %vm150 = vcmp.gt.f32.partialorder %v126, 0.0
  %vm151 = vcmp.gt.f32.partialorder %v129, 0.0
  %vm152 = vcmp.gt.f32.partialorder %v134, 0.0
  %vm153 = vcmp.gt.f32.partialorder %v137, 0.0
  %vm154 = vcmp.gt.f32.partialorder %v142, 0.0
  %vm155 = vcmp.gt.f32.partialorder %v145, 0.0
  %v156 = vmul.f32 %v118, 0.01
  %v157 = vmul.f32 %v121, 0.01
  %v158 = vmul.f32 %v126, 0.01
  %v159 = vmul.f32 %v129, 0.01
  %v160 = vmul.f32 %v134, 0.01
  %v161 = vmul.f32 %v137, 0.01
  %v162 = vmul.f32 %v142, 0.01
  %v163 = vmul.f32 %v145, 0.01
  %v164 = vsel %vm148, %v118, %v156
  %v165 = vsel %vm149, %v121, %v157
  %v166 = vsel %vm150, %v126, %v158
  %v167 = vsel %vm151, %v129, %v159
  %v168 = vsel %vm152, %v134, %v160
  %v169 = vsel %vm153, %v137, %v161
  %v170 = vsel %vm154, %v142, %v162
  %v171 = vsel %vm155, %v145, %v163
  %v172 = vpack.c.bf16 %v165, %v164
  %v173 = vpack.c.bf16 %v167, %v166
  %v174 = vpack.c.bf16 %v169, %v168
  %v175 = vpack.c.bf16 %v171, %v170
  %v176 = vld [vmem:[%s3] sm:$0xf]
  %v177 = vld [vmem:[%s3 + $0x4] sm:$0xf]
  %v178 = vld [vmem:[%s3 + $0x8] sm:$0xf]
  %v179 = vld [vmem:[%s3 + $0xc] sm:$0xf]
  %v180 = vld [vmem:[%s3 + $0x10] sm:$0xf]
  %v181 = vld [vmem:[%s3 + $0x14] sm:$0xf]
  %v182 = vld [vmem:[%s3 + $0x18] sm:$0xf]
  %v183 = vld [vmem:[%s3 + $0x1c] sm:$0xf]
  %v184 = vld [vmem:[%s3 + $0x20] sm:$0xf]
  %v185 = vld [vmem:[%s3 + $0x24] sm:$0xf]
  %v186 = vld [vmem:[%s3 + $0x28] sm:$0xf]
  %v187 = vld [vmem:[%s3 + $0x2c] sm:$0xf]
  %v188 = vld [vmem:[%s4] sm:$0x1]
  %v190 = vlaneseq
  %v191 = vshrl.u32 %v190, 7
  %v192 = vsub.s32 0, %v191
  %v193 = vrot.slane %v188, %v192
  %v207 = vunpack.c.l.b16 %v176
  %v208 = vunpack.c.l.b16 %v177
  %v209 = vunpack.c.l.b16 %v178
  %v210 = vunpack.c.l.b16 %v179
  %v211 = vunpack.c.l.b16 %v180
  %v212 = vunpack.c.l.b16 %v181
  %v213 = vunpack.c.l.b16 %v182
  %v214 = vunpack.c.l.b16 %v183
  %v215 = vunpack.c.l.b16 %v184
  %v216 = vunpack.c.l.b16 %v185
  %v217 = vunpack.c.l.b16 %v186
  %v218 = vunpack.c.l.b16 %v187
  %v219 = vpack.c.b16 %v208, %v207
  %v220 = vpack.c.b16 %v210, %v209
  %v221 = vpack.c.b16 %v212, %v211
  %v222 = vpack.c.b16 %v214, %v213
  %v223 = vpack.c.b16 %v216, %v215
  %v224 = vpack.c.b16 %v218, %v217
  %vm231 = vcmask 785408
  %v233 = vsel %vm231, %v172, 0
  %v236 = vsel %vm231, %v173, 0
  %v239 = vsel %vm231, %v174, 0
  %v242 = vsel %vm231, %v175, 0
  %244 = vmatprep.subr.bf16.mxu0 0
  %245 = vmatpush1.bf16.msra.mxu0 0
  %246 = vmatprep.subr.bf16.mxu0 0
  %247 = vmatpush1.bf16.msra.mxu0 0
  %248 = vmatprep.subr.bf16.mxu0 0
  %249 = vmatpush1.bf16.msra.mxu0 %v224
  %250 = vmatprep.subr.bf16.mxu0 0
  %251 = vmatpush1.bf16.msra.mxu0 %v223
  %252 = vmatprep.subr.bf16.mxu0 0
  %253 = vmatpush1.bf16.msra.mxu0 %v222
  %254 = vmatprep.subr.bf16.mxu0 0
  %255 = vmatpush1.bf16.msra.mxu0 %v221
  %256 = vmatprep.subr.bf16.mxu0 0
  %257 = vmatpush1.bf16.msra.mxu0 %v220
  %258 = vmatprep.subr.bf16.mxu0 0
  %259 = vmatpush1.bf16.msra.mxu0 %v219
  %260 = vmatprep.subr.bf16.mxu0 0
  %261 = vmatpush2.bf16.msra.mxu0 0
  %262 = vmatprep.subr.bf16.mxu0 0
  %263 = vmatpush2.bf16.msra.mxu0 0
  %264 = vmatprep.subr.bf16.mxu0 0
  %265 = vmatpush2.bf16.msra.mxu0 0
  %266 = vmatprep.subr.bf16.mxu0 0
  %267 = vmatpush2.bf16.msra.mxu0 0
  %268 = vmatprep.subr.bf16.mxu0 0
  %269 = vmatpush2.bf16.msra.mxu0 0
  %270 = vmatprep.subr.bf16.mxu0 0
  %271 = vmatpush2.bf16.msra.mxu0 0
  %272 = vmatprep.subr.bf16.mxu0 0
  %273 = vmatpush2.bf16.msra.mxu0 0
  %274 = vmatprep.subr.bf16.mxu0 0
  %275 = vmatpush2.bf16.msra.mxu0 0
  %276 = vmatprep.mubr.bf16.mxu0 0
  %277 = vmatmul.mubr.bf16.gmra.mxu0 %v233
  %v278 = vpop.f32.mrf.mxu0
  %v279 = vadd.f32 %v193, %v278
  %v280 = vpop.f32.mrf.mxu0
  %v281 = vpop.f32.mrf.mxu0
  %v282 = vadd.f32 %v193, %v281
  %v283 = vpop.f32.mrf.mxu0
  %284 = vmatprep.mubr.bf16.mxu0 0
  %285 = vmatmul.mubr.bf16.gmra.mxu0 %v236
  %v286 = vpop.f32.mrf.mxu0
  %v287 = vadd.f32 %v193, %v286
  %v288 = vpop.f32.mrf.mxu0
  %v289 = vpop.f32.mrf.mxu0
  %v290 = vadd.f32 %v193, %v289
  %v291 = vpop.f32.mrf.mxu0
  %292 = vmatprep.mubr.bf16.mxu0 0
  %293 = vmatmul.mubr.bf16.gmra.mxu0 %v239
  %v294 = vpop.f32.mrf.mxu0
  %v295 = vadd.f32 %v193, %v294
  %v296 = vpop.f32.mrf.mxu0
  %v297 = vpop.f32.mrf.mxu0
  %v298 = vadd.f32 %v193, %v297
  %v299 = vpop.f32.mrf.mxu0
  %300 = vmatprep.mubr.bf16.mxu0 0
  %301 = vmatmul.mubr.bf16.gmra.mxu0 %v242
  %v302 = vpop.f32.mrf.mxu0
  %v303 = vadd.f32 %v193, %v302
  %v304 = vpop.f32.mrf.mxu0
  %v305 = vpop.f32.mrf.mxu0
  %v306 = vadd.f32 %v193, %v305
  %v307 = vpop.f32.mrf.mxu0
  %308 = vdwg.mxu0
  %vm309 = vcmp.gt.f32.partialorder %v279, 0.0
  %vm310 = vcmp.gt.f32.partialorder %v282, 0.0
  %vm311 = vcmp.gt.f32.partialorder %v287, 0.0
  %vm312 = vcmp.gt.f32.partialorder %v290, 0.0
  %vm313 = vcmp.gt.f32.partialorder %v295, 0.0
  %vm314 = vcmp.gt.f32.partialorder %v298, 0.0
  %vm315 = vcmp.gt.f32.partialorder %v303, 0.0
  %vm316 = vcmp.gt.f32.partialorder %v306, 0.0
  %v317 = vmul.f32 %v279, 0.01
  %v318 = vmul.f32 %v282, 0.01
  %v319 = vmul.f32 %v287, 0.01
  %v320 = vmul.f32 %v290, 0.01
  %v321 = vmul.f32 %v295, 0.01
  %v322 = vmul.f32 %v298, 0.01
  %v323 = vmul.f32 %v303, 0.01
  %v324 = vmul.f32 %v306, 0.01
  %v325 = vsel %vm309, %v279, %v317
  %v326 = vsel %vm310, %v282, %v318
  %v327 = vsel %vm311, %v287, %v319
  %v328 = vsel %vm312, %v290, %v320
  %v329 = vsel %vm313, %v295, %v321
  %v330 = vsel %vm314, %v298, %v322
  %v331 = vsel %vm315, %v303, %v323
  %v332 = vsel %vm316, %v306, %v324
  %v333 = vpack.c.bf16 %v326, %v325
  %v334 = vpack.c.bf16 %v328, %v327
  %v335 = vpack.c.bf16 %v330, %v329
  %v336 = vpack.c.bf16 %v332, %v331
  %v337 = vld [vmem:[%s5] sm:$0xf]
  %v338 = vld [vmem:[%s5 + $0x4] sm:$0xf]
  %v339 = vld [vmem:[%s5 + $0x8] sm:$0xf]
  %v340 = vld [vmem:[%s5 + $0xc] sm:$0xf]
  %v341 = vld [vmem:[%s5 + $0x10] sm:$0xf]
  %v342 = vld [vmem:[%s5 + $0x14] sm:$0xf]
  %v343 = vld [vmem:[%s5 + $0x18] sm:$0xf]
  %v344 = vld [vmem:[%s5 + $0x1c] sm:$0xf]
  %v345 = vld [vmem:[%s5 + $0x20] sm:$0xf]
  %v346 = vld [vmem:[%s5 + $0x24] sm:$0xf]
  %v347 = vld [vmem:[%s5 + $0x28] sm:$0xf]
  %v348 = vld [vmem:[%s5 + $0x2c] sm:$0xf]
  %v349 = vld [vmem:[%s6] sm:$0x1]
  %v351 = vlaneseq
  %v352 = vshrl.u32 %v351, 7
  %v353 = vsub.s32 0, %v352
  %v354 = vrot.slane %v349, %v353
  %v368 = vunpack.c.l.b16 %v337
  %v369 = vunpack.c.l.b16 %v338
  %v370 = vunpack.c.l.b16 %v339
  %v371 = vunpack.c.l.b16 %v340
  %v372 = vunpack.c.l.b16 %v341
  %v373 = vunpack.c.l.b16 %v342
  %v374 = vunpack.c.l.b16 %v343
  %v375 = vunpack.c.l.b16 %v344
  %v376 = vunpack.c.l.b16 %v345
  %v377 = vunpack.c.l.b16 %v346
  %v378 = vunpack.c.l.b16 %v347
  %v379 = vunpack.c.l.b16 %v348
  %v380 = vpack.c.b16 %v369, %v368
  %v381 = vpack.c.b16 %v371, %v370
  %v382 = vpack.c.b16 %v373, %v372
  %v383 = vpack.c.b16 %v375, %v374
  %v384 = vpack.c.b16 %v377, %v376
  %v385 = vpack.c.b16 %v379, %v378
  %v393 = vsel %vm231, %v333, 0
  %v396 = vsel %vm231, %v334, 0
  %v399 = vsel %vm231, %v335, 0
  %v402 = vsel %vm231, %v336, 0
  %404 = vmatprep.subr.bf16.mxu0 0
  %405 = vmatpush1.bf16.msra.mxu0 0
  %406 = vmatprep.subr.bf16.mxu0 0
  %407 = vmatpush1.bf16.msra.mxu0 0
  %408 = vmatprep.subr.bf16.mxu0 0
  %409 = vmatpush1.bf16.msra.mxu0 %v385
  %410 = vmatprep.subr.bf16.mxu0 0
  %411 = vmatpush1.bf16.msra.mxu0 %v384
  %412 = vmatprep.subr.bf16.mxu0 0
  %413 = vmatpush1.bf16.msra.mxu0 %v383
  %414 = vmatprep.subr.bf16.mxu0 0
  %415 = vmatpush1.bf16.msra.mxu0 %v382
  %416 = vmatprep.subr.bf16.mxu0 0
  %417 = vmatpush1.bf16.msra.mxu0 %v381
  %418 = vmatprep.subr.bf16.mxu0 0
  %419 = vmatpush1.bf16.msra.mxu0 %v380
  %420 = vmatprep.subr.bf16.mxu0 0
  %421 = vmatpush2.bf16.msra.mxu0 0
  %422 = vmatprep.subr.bf16.mxu0 0
  %423 = vmatpush2.bf16.msra.mxu0 0
  %424 = vmatprep.subr.bf16.mxu0 0
  %425 = vmatpush2.bf16.msra.mxu0 0
  %426 = vmatprep.subr.bf16.mxu0 0
  %427 = vmatpush2.bf16.msra.mxu0 0
  %428 = vmatprep.subr.bf16.mxu0 0
  %429 = vmatpush2.bf16.msra.mxu0 0
  %430 = vmatprep.subr.bf16.mxu0 0
  %431 = vmatpush2.bf16.msra.mxu0 0
  %432 = vmatprep.subr.bf16.mxu0 0
  %433 = vmatpush2.bf16.msra.mxu0 0
  %434 = vmatprep.subr.bf16.mxu0 0
  %435 = vmatpush2.bf16.msra.mxu0 0
  %436 = vmatprep.mubr.bf16.mxu0 0
  %437 = vmatmul.mubr.bf16.gmra.mxu0 %v393
  %v438 = vpop.f32.mrf.mxu0
  %v439 = vadd.f32 %v354, %v438
  %v440 = vpop.f32.mrf.mxu0
  %v441 = vpop.f32.mrf.mxu0
  %v442 = vadd.f32 %v354, %v441
  %v443 = vpop.f32.mrf.mxu0
  %444 = vmatprep.mubr.bf16.mxu0 0
  %445 = vmatmul.mubr.bf16.gmra.mxu0 %v396
  %v446 = vpop.f32.mrf.mxu0
  %v447 = vadd.f32 %v354, %v446
  %v448 = vpop.f32.mrf.mxu0
  %v449 = vpop.f32.mrf.mxu0
  %v450 = vadd.f32 %v354, %v449
  %v451 = vpop.f32.mrf.mxu0
  %452 = vmatprep.mubr.bf16.mxu0 0
  %453 = vmatmul.mubr.bf16.gmra.mxu0 %v399
  %v454 = vpop.f32.mrf.mxu0
  %v455 = vadd.f32 %v354, %v454
  %v456 = vpop.f32.mrf.mxu0
  %v457 = vpop.f32.mrf.mxu0
  %v458 = vadd.f32 %v354, %v457
  %v459 = vpop.f32.mrf.mxu0
  %460 = vmatprep.mubr.bf16.mxu0 0
  %461 = vmatmul.mubr.bf16.gmra.mxu0 %v402
  %v462 = vpop.f32.mrf.mxu0
  %v463 = vadd.f32 %v354, %v462
  %v464 = vpop.f32.mrf.mxu0
  %v465 = vpop.f32.mrf.mxu0
  %v466 = vadd.f32 %v354, %v465
  %v467 = vpop.f32.mrf.mxu0
  %468 = vdwg.mxu0
  %vm469 = vcmask 56320
  %470 = vst.msk [vmem:[%s7] sm:$0xff] %vm469, %v439
  %471 = vst.msk [vmem:[%s7 + $0x8] sm:$0xff] %vm469, %v442
  %472 = vst.msk [vmem:[%s7 + $0x10] sm:$0xff] %vm469, %v447
  %473 = vst.msk [vmem:[%s7 + $0x18] sm:$0xff] %vm469, %v450
  %474 = vst.msk [vmem:[%s7 + $0x20] sm:$0xff] %vm469, %v455
  %475 = vst.msk [vmem:[%s7 + $0x28] sm:$0xff] %vm469, %v458
  %476 = vst.msk [vmem:[%s7 + $0x30] sm:$0xff] %vm469, %v463
  %477 = vst.msk [vmem:[%s7 + $0x38] sm:$0xff] %vm469, %v466
  // Predicated region
  $region30: #{tpu_custom_call.1} parent=0 // pred_check
    _
  $region31: #{tpu_custom_call.1} parent=0 // pred_check_branch
    %479 = sbr.rel (0) target = $region33
  $region32: #{tpu_custom_call.1} parent=0 // pred_region
    _
  $region33: #{tpu_custom_call.1} parent=0 // pred_fallthru
    _
  // Predicated region
  $region34: #{tpu_custom_call.1} parent=0 // pred_check
    _
  $region35: #{tpu_custom_call.1} parent=0 // pred_check_branch
    %481 = sbr.rel (0) target = $region37
  $region36: #{tpu_custom_call.1} parent=0 // pred_region
    _
  $region37: #{tpu_custom_call.1} parent=0 // pred_fallthru
    _

</llo_original>
